<compile_context>
chip_gen: v5e
topology: v5e:2x2
jax: 0.10.0
libtpu: 0.0.40
codegen_flags: <defaults>
</compile_context>

<pallas_src>
import functools
import math

import jax
import jax.numpy as jnp
from jax.experimental import pallas as pl
from jax.experimental.pallas import tpu as pltpu


def _round_up(x, m):
    return ((x + m - 1) // m) * m


# --------------------------------------------------------------------------
# Tiled matmul (+ bias, + optional relu)
# --------------------------------------------------------------------------
def _matmul_bias_kernel(a_ref, b_ref, bias_ref, o_ref, acc_ref, *, activation):
    @pl.when(pl.program_id(2) == 0)
    def _():
        acc_ref[...] = jnp.zeros_like(acc_ref)

    acc_ref[...] += jnp.dot(
        a_ref[...], b_ref[...], preferred_element_type=jnp.float32
    )

    @pl.when(pl.program_id(2) == pl.num_programs(2) - 1)
    def _():
        out = acc_ref[...] + bias_ref[...].astype(jnp.float32)
        if activation == "relu":
            out = jnp.maximum(out, 0.0)
        o_ref[...] = out.astype(o_ref.dtype)


def linear(x, w, b=None, activation=None):
    """x: (M, K); w: (K, N); b: (N,) or None.  Returns relu?(x @ w + b)."""
    M, K = x.shape
    K2, N = w.shape
    assert K == K2
    if b is None:
        b = jnp.zeros((N,), dtype=jnp.float32)

    # Tile selection: blocks are either a full dimension (always legal) or a
    # multiple of (8, 128); ragged dims are zero-padded to a tile multiple.
    tm = min(512, _round_up(M, 8))
    Mp = _round_up(M, tm)
    if N <= 256:
        tn, Np = N, N
    else:
        tn = 256
        Np = _round_up(N, tn)
    if K <= 1024:
        tk, Kp = K, K
    else:
        tk = 512
        Kp = _round_up(K, tk)

    xp = jnp.pad(x, ((0, Mp - M), (0, Kp - K))) if (Mp != M or Kp != K) else x
    wp = jnp.pad(w, ((0, Kp - K), (0, Np - N))) if (Kp != K or Np != N) else w
    bp = (jnp.pad(b, (0, Np - N)) if Np != N else b).reshape(1, Np).astype(jnp.float32)

    grid = (Mp // tm, Np // tn, Kp // tk)
    kernel = functools.partial(_matmul_bias_kernel, activation=activation)

    out = pl.pallas_call(
        kernel,
        out_shape=jax.ShapeDtypeStruct((Mp, Np), x.dtype),
        grid_spec=pltpu.PrefetchScalarGridSpec(
            num_scalar_prefetch=0,
            grid=grid,
            in_specs=[
                pl.BlockSpec((tm, tk), lambda i, j, k: (i, k)),
                pl.BlockSpec((tk, tn), lambda i, j, k: (k, j)),
                pl.BlockSpec((1, tn), lambda i, j, k: (0, j)),
            ],
            out_specs=pl.BlockSpec((tm, tn), lambda i, j, k: (i, j)),
            scratch_shapes=[pltpu.VMEM((tm, tn), jnp.float32)],
        ),
        compiler_params=pltpu.CompilerParams(
            dimension_semantics=("parallel", "parallel", "arbitrary")
        ),
    )(xp, wp, bp)

    if Mp != M or Np != N:
        out = out[:M, :N]
    return out


# --------------------------------------------------------------------------
# Per-head softmax attention (non-causal), grid over batch*heads
# --------------------------------------------------------------------------
def _attention_kernel(q_ref, k_ref, v_ref, o_ref, *, scale):
    q = q_ref[0].astype(jnp.float32)          # (S, Dh)
    k = k_ref[0].astype(jnp.float32)          # (S, Dh)
    v = v_ref[0].astype(jnp.float32)          # (S, Dh)

    s = jnp.dot(q, k.T, preferred_element_type=jnp.float32) * (1.0 / scale)
    s = s - jnp.max(s, axis=-1, keepdims=True)
    p = jnp.exp(s)
    p = p * pl.reciprocal(jnp.sum(p, axis=-1, keepdims=True), approx=False)
    o_ref[0] = jnp.dot(p, v, preferred_element_type=jnp.float32).astype(o_ref.dtype)


def attention(q, k, v, *, scale):
    """q, k, v: (BH, S, Dh).  Full non-causal attention per leading index."""
    BH, S, Dh = q.shape
    kernel = functools.partial(_attention_kernel, scale=scale)
    return pl.pallas_call(
        kernel,
        out_shape=jax.ShapeDtypeStruct((BH, S, Dh), q.dtype),
        grid_spec=pltpu.PrefetchScalarGridSpec(
            num_scalar_prefetch=0,
            grid=(BH,),
            in_specs=[
                pl.BlockSpec((1, S, Dh), lambda i: (i, 0, 0)),
                pl.BlockSpec((1, S, Dh), lambda i: (i, 0, 0)),
                pl.BlockSpec((1, S, Dh), lambda i: (i, 0, 0)),
            ],
            out_specs=pl.BlockSpec((1, S, Dh), lambda i: (i, 0, 0)),
        ),
        compiler_params=pltpu.CompilerParams(dimension_semantics=("parallel",)),
    )(q, k, v)


# --------------------------------------------------------------------------
# Fused residual add + LayerNorm (custom PyTorch LayerNorm semantics)
# --------------------------------------------------------------------------
def _residual_layernorm_kernel(x_ref, y_ref, gamma_ref, beta_ref, o_ref, *, eps, d_model):
    x = x_ref[...].astype(jnp.float32) + y_ref[...].astype(jnp.float32)
    mean = jnp.mean(x, axis=-1, keepdims=True)
    diff = x - mean
    var = jnp.sum(diff * diff, axis=-1, keepdims=True) * (1.0 / (d_model - 1))
    std = jnp.sqrt(var)
    # One reciprocal per row on the EUP instead of a per-element divide on the VPU.
    inv = pl.reciprocal(std + jnp.float32(eps), approx=False)
    o_ref[...] = (gamma_ref[...] * (diff * inv) + beta_ref[...]).astype(o_ref.dtype)


def residual_layer_norm(x, y, gamma, beta, *, eps=1e-6):
    """LayerNorm(x + y) over the last dim.  x, y: (rows, d_model)."""
    rows, d_model = x.shape

    # Row-tile sizing: as large as a conservative VMEM byte budget allows
    # (~6 live f32 tiles: x, y, out, each double-buffered).  8 MiB keeps us
    # well inside the default scoped VMEM on v5e (16 MiB) and v7x (32 MiB).
    vmem_budget = 8 * 1024 * 1024
    per_row_bytes = 6 * d_model * 4
    cap = max(8, (vmem_budget // per_row_bytes) // 8 * 8)
    tile_rows = min(1024, cap, _round_up(rows, 8))
    tile_rows = max(8, (tile_rows // 8) * 8)

    rows_p = _round_up(rows, tile_rows)
    if rows_p != rows:
        pad = ((0, rows_p - rows), (0, 0))
        x = jnp.pad(x, pad)
        y = jnp.pad(y, pad)

    gamma2d = gamma.reshape(1, d_model).astype(jnp.float32)
    beta2d = beta.reshape(1, d_model).astype(jnp.float32)

    grid = (rows_p // tile_rows,)
    kernel = functools.partial(_residual_layernorm_kernel, eps=eps, d_model=d_model)

    out = pl.pallas_call(
        kernel,
        out_shape=jax.ShapeDtypeStruct((rows_p, d_model), x.dtype),
        grid_spec=pltpu.PrefetchScalarGridSpec(
            num_scalar_prefetch=0,
            grid=grid,
            in_specs=[
                pl.BlockSpec((tile_rows, d_model), lambda i: (i, 0)),
                pl.BlockSpec((tile_rows, d_model), lambda i: (i, 0)),
                pl.BlockSpec((1, d_model), lambda i: (0, 0)),
                pl.BlockSpec((1, d_model), lambda i: (0, 0)),
            ],
            out_specs=pl.BlockSpec((tile_rows, d_model), lambda i: (i, 0)),
        ),
        compiler_params=pltpu.CompilerParams(dimension_semantics=("parallel",)),
    )(x, y, gamma2d, beta2d)

    return out[:rows] if rows_p != rows else out


# --------------------------------------------------------------------------
# Full EncoderLayer forward (eval mode)
# --------------------------------------------------------------------------
def encoder_layer_forward(x, params, *, n_heads, eps=1e-6):
    B, S, D = x.shape
    dh = D // n_heads
    x2d = x.reshape(B * S, D)

    # ---- self-attention sublayer ----
    # Fuse the (bias-free) q/k/v projections into one matmul over x.
    wqkv = jnp.concatenate([params["wq"], params["wk"], params["wv"]], axis=1)
    qkv = linear(x2d, wqkv)
    q, k, v = qkv[:, :D], qkv[:, D:2 * D], qkv[:, 2 * D:]

    def split_heads(t2d):
        # torch .chunk(n_heads, -1): head h takes contiguous columns [h*dh, (h+1)*dh)
        return (t2d.reshape(B, S, n_heads, dh)
                    .transpose(0, 2, 1, 3)
                    .reshape(B * n_heads, S, dh))

    # Attention is constructed with d_key = d_model, so scale = sqrt(d_model).
    attn = attention(split_heads(q), split_heads(k), split_heads(v),
                     scale=math.sqrt(D))
    attn = (attn.reshape(B, n_heads, S, dh)
                .transpose(0, 2, 1, 3)
                .reshape(B * S, D))
    attn = linear(attn, params["wo"])
    h2d = residual_layer_norm(x2d, attn, params["ln1_g"], params["ln1_b"], eps=eps)

    # ---- feed-forward sublayer ----
    ff = linear(h2d, params["w1"], params["b1"], activation="relu")
    ff = linear(ff, params["w2"], params["b2"])
    out2d = residual_layer_norm(h2d, ff, params["ln2_g"], params["ln2_b"], eps=eps)
    return out2d.reshape(B, S, D)


# --------------------------------------------------------------------------
# Pure-JAX reference (same math as the PyTorch module, eval mode)
# --------------------------------------------------------------------------
def ref_encoder_layer(x, params, *, n_heads, eps):
    B, S, D = x.shape

    def lin(t, w, b=None):
        y = jnp.matmul(t, w)
        return y if b is None else y + b

    def ln(t, g, b):
        d = t.shape[-1]
        mean = jnp.mean(t, axis=-1, keepdims=True)
        std = jnp.sqrt(jnp.sum((t - mean) ** 2, axis=-1, keepdims=True) / (d - 1))
        return g * (t - mean) / (std + eps) + b

    q, k, v = lin(x, params["wq"]), lin(x, params["wk"]), lin(x, params["wv"])
    dh = D // n_heads

    def split(t):
        return t.reshape(B, S, n_heads, dh).transpose(0, 2, 1, 3)

    qh, kh, vh = split(q), split(k), split(v)
    s = jnp.einsum("bhqd,bhkd->bhqk", qh, kh) / math.sqrt(D)
    p = jax.nn.softmax(s, axis=-1)
    o = jnp.einsum("bhqk,bhkd->bhqd", p, vh).transpose(0, 2, 1, 3).reshape(B, S, D)
    attn = lin(o, params["wo"])
    h = ln(x + attn, params["ln1_g"], params["ln1_b"])
    ff = lin(jnp.maximum(lin(h, params["w1"], params["b1"]), 0.0),
             params["w2"], params["b2"])
    return ln(h + ff, params["ln2_g"], params["ln2_b"])


if __name__ == "__main__":
    batch, seq, d_model, d_hidden, n_heads = 2, 8, 32, 64, 4
    eps = 1e-6

    key = jax.random.PRNGKey(0)
    keys = jax.random.split(key, 12)
    x = jax.random.normal(keys[0], (batch, seq, d_model), dtype=jnp.float32)

    def init_w(k, fan_in, fan_out):
        bound = 1.0 / math.sqrt(fan_in)
        return jax.random.uniform(k, (fan_in, fan_out), jnp.float32, -bound, bound)

    params = {
        "wq": init_w(keys[1], d_model, d_model),
        "wk": init_w(keys[2], d_model, d_model),
        "wv": init_w(keys[3], d_model, d_model),
        "wo": init_w(keys[4], d_model, d_model),
        "ln1_g": jnp.ones((d_model,), jnp.float32)
                 + 0.1 * jax.random.normal(keys[5], (d_model,), jnp.float32),
        "ln1_b": 0.1 * jax.random.normal(keys[6], (d_model,), jnp.float32),
        "w1": init_w(keys[7], d_model, d_hidden),
        "b1": 0.1 * jax.random.normal(keys[8], (d_hidden,), jnp.float32),
        "w2": init_w(keys[9], d_hidden, d_model),
        "b2": 0.1 * jax.random.normal(keys[10], (d_model,), jnp.float32),
        "ln2_g": jnp.ones((d_model,), jnp.float32)
                 + 0.1 * jax.random.normal(keys[11], (d_model,), jnp.float32),
        "ln2_b": jnp.zeros((d_model,), jnp.float32),
    }

    out = encoder_layer_forward(x, params, n_heads=n_heads, eps=eps)
    out = jax.block_until_ready(out)

    with jax.default_matmul_precision("highest"):
        ref = ref_encoder_layer(x, params, n_heads=n_heads, eps=eps)
    ref = jax.block_until_ready(ref)

    assert out.shape == ref.shape
    max_err = float(jnp.max(jnp.abs(out - ref)))
    assert jnp.allclose(out, ref, atol=2e-3, rtol=2e-3), (
        f"mismatch vs reference (max abs err {max_err})"
    )

    print("KERNEL_OK")
</pallas_src>

<mosaic_0001>
module attributes {stable_mosaic.version = 11 : i64} {
  func.func @_matmul_bias_kernel(%arg0: i32, %arg1: i32, %arg2: i32, %arg3: memref<16x32xf32, #tpu.memory_space<vmem>>, %arg4: memref<32x96xf32, #tpu.memory_space<vmem>>, %arg5: memref<1x96xf32, #tpu.memory_space<vmem>>, %arg6: memref<16x96xf32, #tpu.memory_space<vmem>>, %arg7: memref<16x96xf32, #tpu.memory_space<vmem>>) attributes {dimension_semantics = [#tpu.dimension_semantics<parallel>, #tpu.dimension_semantics<parallel>, #tpu.dimension_semantics<arbitrary>], iteration_bounds = array<i64: 1, 1, 1>, scalar_prefetch = 0 : i64, scratch_operands = 1 : i64, tpu.core_type = #tpu.core_type<tc>, window_params = [{transform_indices = @transform_0, window_bounds = array<i64: 16, 32>}, {transform_indices = @transform_1, window_bounds = array<i64: 32, 96>}, {transform_indices = @transform_2, window_bounds = array<i64: 1, 96>}, {transform_indices = @transform_3, window_bounds = array<i64: 16, 96>}]} {
    %c0_i32 = arith.constant 0 : i32
    %0 = arith.cmpi eq, %arg2, %c0_i32 : i32
    %1 = arith.extui %0 : i1 to i32
    %c0_i32_0 = arith.constant 0 : i32
    %2 = arith.cmpi ne, %1, %c0_i32_0 : i32
    scf.if %2 {
      %cst_10 = arith.constant 0.000000e+00 : f32
      %12 = vector.broadcast %cst_10 : f32 to vector<16x96xf32>
      %c0_11 = arith.constant 0 : index
      %c0_12 = arith.constant 0 : index
      %13 = vector.load %arg7[%c0_11, %c0_12] : memref<16x96xf32, #tpu.memory_space<vmem>>, vector<16x96xf32>
      tpu.vector_store %arg7[%c0_11, %c0_12], %12 {strides = array<i32>} : memref<16x96xf32, #tpu.memory_space<vmem>>, vector<16x96xf32>,
    } else {
    }
    %c0 = arith.constant 0 : index
    %c0_1 = arith.constant 0 : index
    %3 = vector.load %arg7[%c0, %c0_1] : memref<16x96xf32, #tpu.memory_space<vmem>>, vector<16x96xf32>
    %c0_2 = arith.constant 0 : index
    %c0_3 = arith.constant 0 : index
    %4 = vector.load %arg3[%c0_2, %c0_3] : memref<16x32xf32, #tpu.memory_space<vmem>>, vector<16x32xf32>
    %c0_4 = arith.constant 0 : index
    %c0_5 = arith.constant 0 : index
    %5 = vector.load %arg4[%c0_4, %c0_5] : memref<32x96xf32, #tpu.memory_space<vmem>>, vector<32x96xf32>
    %cst = arith.constant dense<0.000000e+00> : vector<16x96xf32>
    %6 = tpu.matmul %4, %5, %cst {dimension_numbers = #tpu.dot_dimension_numbers<[1], [0], [0], [1], [0, 0, 1, 1], [], []>} : vector<16x32xf32>, vector<32x96xf32>, vector<16x96xf32> -> vector<16x96xf32>
    %7 = arith.addf %3, %6 : vector<16x96xf32>
    %c0_6 = arith.constant 0 : index
    %c0_7 = arith.constant 0 : index
    %8 = vector.load %arg7[%c0_6, %c0_7] : memref<16x96xf32, #tpu.memory_space<vmem>>, vector<16x96xf32>
    tpu.vector_store %arg7[%c0_6, %c0_7], %7 {strides = array<i32>} : memref<16x96xf32, #tpu.memory_space<vmem>>, vector<16x96xf32>,
    %c0_i32_8 = arith.constant 0 : i32
    %9 = arith.cmpi eq, %arg2, %c0_i32_8 : i32
    %10 = arith.extui %9 : i1 to i32
    %c0_i32_9 = arith.constant 0 : i32
    %11 = arith.cmpi ne, %10, %c0_i32_9 : i32
    scf.if %11 {
      %c0_10 = arith.constant 0 : index
      %c0_11 = arith.constant 0 : index
      %12 = vector.load %arg7[%c0_10, %c0_11] : memref<16x96xf32, #tpu.memory_space<vmem>>, vector<16x96xf32>
      %c0_12 = arith.constant 0 : index
      %c0_13 = arith.constant 0 : index
      %13 = vector.load %arg5[%c0_12, %c0_13] : memref<1x96xf32, #tpu.memory_space<vmem>>, vector<1x96xf32>
      %14 = vector.broadcast %13 : vector<1x96xf32> to vector<16x96xf32>
      %15 = arith.addf %12, %14 : vector<16x96xf32>
      %c0_14 = arith.constant 0 : index
      %c0_15 = arith.constant 0 : index
      %16 = vector.load %arg6[%c0_14, %c0_15] : memref<16x96xf32, #tpu.memory_space<vmem>>, vector<16x96xf32>
      tpu.vector_store %arg6[%c0_14, %c0_15], %15 {strides = array<i32>} : memref<16x96xf32, #tpu.memory_space<vmem>>, vector<16x96xf32>,
    } else {
    }
    return
  }
  func.func @transform_0(%arg0: i32, %arg1: i32, %arg2: i32) -> (i32, i32) {
    %c0_i32 = arith.constant 0 : i32
    return %arg0, %arg2 : i32, i32
  }
  func.func @transform_1(%arg0: i32, %arg1: i32, %arg2: i32) -> (i32, i32) {
    %c0_i32 = arith.constant 0 : i32
    return %arg2, %arg1 : i32, i32
  }
  func.func @transform_2(%arg0: i32, %arg1: i32, %arg2: i32) -> (i32, i32) {
    %c0_i32 = arith.constant 0 : i32
    %c0_i32_0 = arith.constant 0 : i32
    return %c0_i32, %arg1 : i32, i32
  }
  func.func @transform_3(%arg0: i32, %arg1: i32, %arg2: i32) -> (i32, i32) {
    %c0_i32 = arith.constant 0 : i32
    return %arg0, %arg1 : i32, i32
  }
}

</mosaic_0001>

<llo_original>
// kernel: tpu_custom_call.1
$region0: #{tpu_custom_call.1}
  #allocation0 [shape = 'u32[]', space=smem, size = 0x4, offset = 0x4, fixed_abs, tag = 'smem constant byte address 0x4 - core index']
  #allocation1 [shape = 'u32[72,128]{1,0:T(1,128)}', space=vmem, size = 0x9000, scoped, tag = 'internal scratch']
  #allocation2 [shape = 'f32[16,96]{1,0:T(8,128)}', space=vmem, size = 0x2000, scoped, tag = 'scratch operand']
  %s0 = inlined_call_operand.hbm [shape: f32[16,32], index: 0, kind: input, shape index: {}]
  %s1 = inlined_call_operand.hbm [shape: f32[32,96], index: 1, kind: input, shape index: {}]
  %s2 = inlined_call_operand.vmem [shape: f32[1,96], index: 2, kind: input, shape index: {}]
  %s3 = inlined_call_operand.hbm [shape: f32[16,96], index: 3, kind: output, shape index: {}]
  %s4 = sld [smem:[#allocation0]]
  $region38: #{tpu_custom_call.1} parent=0
    _
  %s6 = ssub.s32 1, %s4
  %s7 = scalar_select 0, %s6, %s4
  $region1: #{tpu_custom_call.1} parent=0
    #allocation3 [shape = 'u8[8192]{0}', space=vmem, size = 0x2000, scoped, tag = 'input window, operand 0, single buffered']
    #allocation4 [shape = 's32[1]{0}', space=sflag, size = 0x4, scoped, tag = 'scoped memory for tpu_custom_call.1']
    #allocation5 [shape = 's32[1]{0}', space=sflag, size = 0x4, scoped, tag = 'scoped memory for tpu_custom_call.1']
    #allocation6 [shape = 'u8[16384]{0}', space=vmem, size = 0x4000, scoped, tag = 'input window, operand 1, single buffered']
    #allocation7 [shape = 's32[1]{0}', space=sflag, size = 0x4, scoped, tag = 'scoped memory for tpu_custom_call.1']
    #allocation8 [shape = 'u8[8192]{0}', space=vmem, size = 0x2000, scoped, tag = 'output window, operand 0, single buffered']
    %8 = vsyncpa [#allocation4], 0
    %9 = vsyncpa [#allocation7], 0
    %10 = vsyncpa [#allocation5], 0
    // Predicated region
    $region2: #{tpu_custom_call.1} parent=1 // pred_check
      _
    $region3: #{tpu_custom_call.1} parent=1 // pred_check_branch
      %12 = sbr.rel (0) target = $region5
    $region4: #{tpu_custom_call.1} parent=1 // pred_region
      %14 = vsyncadd [#allocation4], 0
      %s15 = sshll.u32 %s0, 4
      %s16 = int_to_ptr.hbm [resolvable:$true] %s15
      %s17 = sshll.u32 [#allocation3], 4
      %s18 = int_to_ptr.vmem [resolvable:$true] %s17
      %23 = dma.hbm_to_vmem [thread:$0]  %s16, 256, %s18, [#allocation4], 128, 128, 8
    $region5: #{tpu_custom_call.1} parent=1 // pred_fallthru
      _
    // Predicated region
    $region6: #{tpu_custom_call.1} parent=1 // pred_check
      _
    $region7: #{tpu_custom_call.1} parent=1 // pred_check_branch
      %25 = sbr.rel (0) target = $region9
    $region8: #{tpu_custom_call.1} parent=1 // pred_region
      %27 = vsyncadd [#allocation7], 0
      %s28 = sshll.u32 %s1, 4
      %s29 = int_to_ptr.hbm [resolvable:$true] %s28
      %s30 = sshll.u32 [#allocation6], 4
      %s31 = int_to_ptr.vmem [resolvable:$true] %s30
      %36 = dma.hbm_to_vmem [thread:$0]  %s29, 512, %s31, [#allocation7], 128, 128, 8
    $region9: #{tpu_custom_call.1} parent=1 // pred_fallthru
      _
    // Predicated region
    $region10: #{tpu_custom_call.1} parent=1 // pred_check
      _
    $region11: #{tpu_custom_call.1} parent=1 // pred_check_branch
      %38 = sbr.rel (0) target = $region13
    $region12: #{tpu_custom_call.1} parent=1 // pred_region
      _
    $region13: #{tpu_custom_call.1} parent=1 // pred_fallthru
      _
    // Predicated region
    $region14: #{tpu_custom_call.1} parent=1 // pred_check
      _
    $region15: #{tpu_custom_call.1} parent=1 // pred_check_branch
      %40 = sbr.rel (0) target = $region17
    $region16: #{tpu_custom_call.1} parent=1 // pred_region
      %42 = dma.done [#allocation4], 256
    $region17: #{tpu_custom_call.1} parent=1 // pred_fallthru
      _
    // Predicated region
    $region18: #{tpu_custom_call.1} parent=1 // pred_check
      _
    $region19: #{tpu_custom_call.1} parent=1 // pred_check_branch
      %44 = sbr.rel (0) target = $region21
    $region20: #{tpu_custom_call.1} parent=1 // pred_region
      %46 = dma.done [#allocation7], 512
    $region21: #{tpu_custom_call.1} parent=1 // pred_fallthru
      _
    %p47 = scmp.eq.s32.totalorder 0, 0
    // Predicated region
    $region22: #{tpu_custom_call.1} parent=1 // pred_check
      %p48 = pneg %p47
    $region23: #{tpu_custom_call.1} parent=1 // pred_check_branch
      %50 = sbr.rel (%p48) target = $region25
    $region24: #{tpu_custom_call.1} parent=1 // pred_region
      %vm51 = vcmask 785408
      %52 = vst.msk [vmem:[#allocation2] sm:$0xff] %vm51, 0.0
      %53 = vst.msk [vmem:[#allocation2 + $0x8] sm:$0xff] %vm51, 0.0
    $region25: #{tpu_custom_call.1} parent=1 // pred_fallthru
      _
    %v54 = vld [vmem:[#allocation2] sm:$0xff]
    %v55 = vld [vmem:[#allocation2 + $0x8] sm:$0xff]
    %v56 = vld [vmem:[#allocation3] sm:$0xff]
    %v57 = vld [vmem:[#allocation3 + $0x8] sm:$0xff]
    %v58 = vld [vmem:[#allocation6] sm:$0xff]
    %v59 = vld [vmem:[#allocation6 + $0x8] sm:$0xff]
    %v60 = vld [vmem:[#allocation6 + $0x10] sm:$0xff]
    %v61 = vld [vmem:[#allocation6 + $0x18] sm:$0xff]
    %vm62 = vcmask 261120
    %v64 = vsel %vm62, %v56, 0
    %v67 = vsel %vm62, %v57, 0
    %69 = vmatpush.msra.mxu0 0.0
    %70 = vmatpush.msra.mxu0 0.0
    %71 = vmatpush.msra.mxu0 0.0
    %72 = vmatpush.msra.mxu0 0.0
    %73 = vmatpush.msra.mxu0 0.0
    %74 = vmatpush.msra.mxu0 0.0
    %75 = vmatpush.msra.mxu0 0.0
    %76 = vmatpush.msra.mxu0 0.0
    %77 = vmatpush.msra.mxu0 0.0
    %78 = vmatpush.msra.mxu0 0.0
    %79 = vmatpush.msra.mxu0 0.0
    %80 = vmatpush.msra.mxu0 0.0
    %81 = vmatpush.msra.mxu0 %v61
    %82 = vmatpush.msra.mxu0 %v60
    %83 = vmatpush.msra.mxu0 %v59
    %84 = vmatpush.msra.mxu0 %v58
    %85 = vmatmul.f32.gmra.mxu0 %v64
    %v86 = vpop.f32.mrf.mxu0
    %v87 = vadd.f32 0.0, %v86
    %88 = vmatmul.f32.gmra.mxu0 %v67
    %v89 = vpop.f32.mrf.mxu0
    %v90 = vadd.f32 0.0, %v89
    %91 = vdwg.mxu0
    %v92 = vadd.f32 %v54, %v87
    %v93 = vadd.f32 %v55, %v90
    %vm94 = vcmask 785408
    %95 = vst.msk [vmem:[#allocation2] sm:$0xff] %vm94, %v92
    %96 = vst.msk [vmem:[#allocation2 + $0x8] sm:$0xff] %vm94, %v93
    // Predicated region
    $region26: #{tpu_custom_call.1} parent=1 // pred_check
      %p97 = pneg %p47
    $region27: #{tpu_custom_call.1} parent=1 // pred_check_branch
      %99 = sbr.rel (%p97) target = $region29
    $region28: #{tpu_custom_call.1} parent=1 // pred_region
      %v100 = vld [vmem:[#allocation2] sm:$0xff]
      %v101 = vld [vmem:[#allocation2 + $0x8] sm:$0xff]
      %v102 = vld [vmem:[%s2] sm:$0x1]
      %v104 = vperm.slane %v102, 0
      %v106 = vadd.f32 %v100, %v104
      %v107 = vadd.f32 %v101, %v104
      %108 = vst.msk [vmem:[#allocation8] sm:$0xff] %vm94, %v106
      %109 = vst.msk [vmem:[#allocation8 + $0x8] sm:$0xff] %vm94, %v107
    $region29: #{tpu_custom_call.1} parent=1 // pred_fallthru
      _
    // Predicated region
    $region30: #{tpu_custom_call.1} parent=1 // pred_check
      _
    $region31: #{tpu_custom_call.1} parent=1 // pred_check_branch
      %111 = sbr.rel (0) target = $region33
    $region32: #{tpu_custom_call.1} parent=1 // pred_region
      %113 = vsyncadd [#allocation5], 0
      %s114 = sshll.u32 [#allocation8], 4
      %s115 = int_to_ptr.vmem [resolvable:$true] %s114
      %s116 = sshll.u32 %s3, 4
      %s117 = int_to_ptr.hbm [resolvable:$true] %s116
      %122 = dma.vmem_to_hbm [thread:$0]  %s115, 256, %s117, [#allocation5], 128, 128, 8
    $region33: #{tpu_custom_call.1} parent=1 // pred_fallthru
      _
    // Predicated region
    $region34: #{tpu_custom_call.1} parent=1 // pred_check
      _
    $region35: #{tpu_custom_call.1} parent=1 // pred_check_branch
      %124 = sbr.rel (0) target = $region37
    $region36: #{tpu_custom_call.1} parent=1 // pred_region
      %126 = dma.done [#allocation5], 256
    $region37: #{tpu_custom_call.1} parent=1 // pred_fallthru
      _
    %127 = vsyncpa [#allocation4], 1
    %128 = vsyncpa [#allocation7], 1
    %129 = vsyncpa [#allocation5], 1

</llo_original>
